<compile_context>
chip_gen: v7x
topology: tpu7x:2x2x1
jax: 0.10.0
libtpu: 0.0.40
codegen_flags: <defaults>
</compile_context>

<pallas_src>
import functools

import jax
import jax.numpy as jnp
from jax.experimental import pallas as pl
from jax.experimental.pallas import tpu as pltpu


def _round_up(x, m):
    return (x + m - 1) // m * m


def _csbe_kernel(labels_ref, w_hi_ref, w_mid_ref, w_lo_ref, out_ref):
    # labels_ref: (TB, 1)   int32  -- class label per output row of this tile
    # w_*_ref:    (NCp, IS) bf16   -- 3-way bf16 split of sigmoid(table), VMEM-resident
    # out_ref:    (TB, IS)  f32
    tb = out_ref.shape[0]
    ncp = w_hi_ref.shape[0]

    # One-hot row selector on the VPU; 0.0 / 1.0 are exact in bf16.
    classes = jax.lax.broadcasted_iota(jnp.int32, (tb, ncp), 1)
    one_hot = (labels_ref[...] == classes).astype(jnp.bfloat16)

    # Gather on the MXU: out = one_hot @ (hi + mid + lo).  Each dot is a single
    # bf16 MXU pass with f32 accumulation; since exactly one one-hot entry per
    # row is 1, the sum reconstructs the f32 sigmoid value essentially exactly.
    acc = jnp.dot(one_hot, w_hi_ref[...], preferred_element_type=jnp.float32)
    acc = acc + jnp.dot(one_hot, w_mid_ref[...], preferred_element_type=jnp.float32)
    acc = acc + jnp.dot(one_hot, w_lo_ref[...], preferred_element_type=jnp.float32)
    out_ref[...] = acc


@functools.partial(jax.jit, static_argnames=("block_batch",))
def class_specific_band_enhancement(class_weights, class_labels, *, block_batch=1024):
    """sigmoid(class_weights[class_labels]) via a tiled Pallas TPU kernel.

    class_weights: (num_classes, input_size) float
    class_labels:  (batch,) integer
    returns:       (batch, input_size) float32
    """
    num_classes, input_size = class_weights.shape
    batch = class_labels.shape[0]

    if batch == 0:  # guard: grid=(0,) would not compile
        return jnp.zeros((0, input_size), jnp.float32)

    # Sigmoid once, on the small unpadded table (hoisted out of the kernel).
    table = jax.nn.sigmoid(class_weights.astype(jnp.float32))

    # MXU-align the class (K) axis.  Padding with zeros AFTER the sigmoid means
    # padded rows contribute nothing even if they were ever selected.
    nc_p = _round_up(num_classes, 128)
    table_p = jnp.zeros((nc_p, input_size), jnp.float32).at[:num_classes].set(table)

    # 3-way bf16 split: hi + mid + lo ~= table to ~2^-24 relative error.
    w_hi = table_p.astype(jnp.bfloat16)
    r1 = table_p - w_hi.astype(jnp.float32)
    w_mid = r1.astype(jnp.bfloat16)
    r2 = r1 - w_mid.astype(jnp.float32)
    w_lo = r2.astype(jnp.bfloat16)

    # Batch tiling: multiple of 8 sublanes, capped to keep VMEM use modest
    # (~3 MiB at TB=1024, IS=200 incl. double buffering -> fits every gen).
    b8 = _round_up(batch, 8)
    tb = min(_round_up(block_batch, 8), b8)
    b_p = _round_up(b8, tb)

    # Clamp labels (the in-kernel one-hot has no bounds check) and pad batch.
    # TODO(synk): PyTorch would raise on out-of-range labels; we clamp instead.
    labels = jnp.clip(class_labels.astype(jnp.int32), 0, num_classes - 1)
    labels = jnp.zeros((b_p,), jnp.int32).at[:batch].set(labels).reshape(b_p, 1)

    grid = (b_p // tb,)
    cost = pl.CostEstimate(
        flops=3 * 2 * b_p * nc_p * input_size,
        transcendentals=0,
        bytes_accessed=b_p * input_size * 4 + 3 * nc_p * input_size * 2 + b_p * 4,
    )

    out = pl.pallas_call(
        _csbe_kernel,
        out_shape=jax.ShapeDtypeStruct((b_p, input_size), jnp.float32),
        grid=grid,
        in_specs=[
            pl.BlockSpec((tb, 1), lambda i: (i, 0)),             # labels tile
            pl.BlockSpec((nc_p, input_size), lambda i: (0, 0)),  # resident table (hi)
            pl.BlockSpec((nc_p, input_size), lambda i: (0, 0)),  # resident table (mid)
            pl.BlockSpec((nc_p, input_size), lambda i: (0, 0)),  # resident table (lo)
        ],
        out_specs=pl.BlockSpec((tb, input_size), lambda i: (i, 0)),
        compiler_params=pltpu.CompilerParams(
            dimension_semantics=("parallel",),
        ),
        cost_estimate=cost,
    )(labels, w_hi, w_mid, w_lo)

    if b_p != batch:
        out = out[:batch]  # row slice only; no padded-column pass
    return out


if __name__ == "__main__":
    # Module defaults (input_size=200, num_classes=16) at a small batch.
    num_classes = 16
    input_size = 200
    batch = 8

    key = jax.random.PRNGKey(0)
    kw, kl = jax.random.split(key)

    # nn.Parameter(torch.ones(...)) would make the gather unobservable;
    # use deterministic random weights so row selection is exercised.
    class_weights = jax.random.normal(kw, (num_classes, input_size), dtype=jnp.float32)
    class_labels = jax.random.randint(kl, (batch,), 0, num_classes, dtype=jnp.int32)

    out = class_specific_band_enhancement(class_weights, class_labels)
    out = jax.block_until_ready(out)

    # Reference check against plain JAX.
    ref = jax.nn.sigmoid(class_weights[class_labels])
    assert out.shape == (batch, input_size)
    assert jnp.allclose(out, ref, atol=1e-6, rtol=1e-6), "mismatch vs reference"

    print("KERNEL_OK")
</pallas_src>

<mosaic_0001>
module attributes {stable_mosaic.version = 11 : i64} {
  func.func @_csbe_kernel(%arg0: i32, %arg1: memref<8x1xi32, #tpu.memory_space<vmem>>, %arg2: memref<128x200xbf16, #tpu.memory_space<vmem>>, %arg3: memref<128x200xbf16, #tpu.memory_space<vmem>>, %arg4: memref<128x200xbf16, #tpu.memory_space<vmem>>, %arg5: memref<8x200xf32, #tpu.memory_space<vmem>>) attributes {dimension_semantics = [#tpu.dimension_semantics<parallel>], iteration_bounds = array<i64: 1>, scalar_prefetch = 0 : i64, scratch_operands = 0 : i64, tpu.core_type = #tpu.core_type<tc>, window_params = [{transform_indices = @transform_0, window_bounds = array<i64: 8, 1>}, {pipeline_mode = #tpu.pipeline_mode<synchronous>, transform_indices = @transform_1, window_bounds = array<i64: 128, 200>}, {pipeline_mode = #tpu.pipeline_mode<synchronous>, transform_indices = @transform_2, window_bounds = array<i64: 128, 200>}, {pipeline_mode = #tpu.pipeline_mode<synchronous>, transform_indices = @transform_3, window_bounds = array<i64: 128, 200>}, {transform_indices = @transform_4, window_bounds = array<i64: 8, 200>}]} {
    %0 = tpu.iota {dimensions = array<i32: 1>} : vector<8x128xi32>
    %c0 = arith.constant 0 : index
    %c0_0 = arith.constant 0 : index
    %1 = vector.load %arg1[%c0, %c0_0] : memref<8x1xi32, #tpu.memory_space<vmem>>, vector<8x1xi32>
    %2 = vector.broadcast %1 : vector<8x1xi32> to vector<8x128xi32>
    %3 = arith.cmpi eq, %2, %0 : vector<8x128xi32>
    %4 = arith.extui %3 : vector<8x128xi1> to vector<8x128xi32>
    %5 = arith.sitofp %4 : vector<8x128xi32> to vector<8x128xf32>
    %6 = arith.truncf %5 : vector<8x128xf32> to vector<8x128xbf16>
    %c0_1 = arith.constant 0 : index
    %c0_2 = arith.constant 0 : index
    %7 = vector.load %arg2[%c0_1, %c0_2] : memref<128x200xbf16, #tpu.memory_space<vmem>>, vector<128x200xbf16>
    %cst = arith.constant dense<0.000000e+00> : vector<8x200xf32>
    %8 = tpu.matmul %6, %7, %cst {dimension_numbers = #tpu.dot_dimension_numbers<[1], [0], [0], [1], [0, 0, 1, 1], [], []>} : vector<8x128xbf16>, vector<128x200xbf16>, vector<8x200xf32> -> vector<8x200xf32>
    %c0_3 = arith.constant 0 : index
    %c0_4 = arith.constant 0 : index
    %9 = vector.load %arg3[%c0_3, %c0_4] : memref<128x200xbf16, #tpu.memory_space<vmem>>, vector<128x200xbf16>
    %cst_5 = arith.constant dense<0.000000e+00> : vector<8x200xf32>
    %10 = tpu.matmul %6, %9, %cst_5 {dimension_numbers = #tpu.dot_dimension_numbers<[1], [0], [0], [1], [0, 0, 1, 1], [], []>} : vector<8x128xbf16>, vector<128x200xbf16>, vector<8x200xf32> -> vector<8x200xf32>
    %11 = arith.addf %8, %10 : vector<8x200xf32>
    %c0_6 = arith.constant 0 : index
    %c0_7 = arith.constant 0 : index
    %12 = vector.load %arg4[%c0_6, %c0_7] : memref<128x200xbf16, #tpu.memory_space<vmem>>, vector<128x200xbf16>
    %cst_8 = arith.constant dense<0.000000e+00> : vector<8x200xf32>
    %13 = tpu.matmul %6, %12, %cst_8 {dimension_numbers = #tpu.dot_dimension_numbers<[1], [0], [0], [1], [0, 0, 1, 1], [], []>} : vector<8x128xbf16>, vector<128x200xbf16>, vector<8x200xf32> -> vector<8x200xf32>
    %14 = arith.addf %11, %13 : vector<8x200xf32>
    %c0_9 = arith.constant 0 : index
    %c0_10 = arith.constant 0 : index
    %15 = vector.load %arg5[%c0_9, %c0_10] : memref<8x200xf32, #tpu.memory_space<vmem>>, vector<8x200xf32>
    tpu.vector_store %arg5[%c0_9, %c0_10], %14 {strides = array<i32>} : memref<8x200xf32, #tpu.memory_space<vmem>>, vector<8x200xf32>,
    return
  }
  func.func @transform_0(%arg0: i32) -> (i32, i32) {
    %c0_i32 = arith.constant 0 : i32
    %c0_i32_0 = arith.constant 0 : i32
    return %arg0, %c0_i32 : i32, i32
  }
  func.func @transform_1(%arg0: i32) -> (i32, i32) {
    %c0_i32 = arith.constant 0 : i32
    %c0_i32_0 = arith.constant 0 : i32
    %c0_i32_1 = arith.constant 0 : i32
    return %c0_i32, %c0_i32_0 : i32, i32
  }
  func.func @transform_2(%arg0: i32) -> (i32, i32) {
    %c0_i32 = arith.constant 0 : i32
    %c0_i32_0 = arith.constant 0 : i32
    %c0_i32_1 = arith.constant 0 : i32
    return %c0_i32, %c0_i32_0 : i32, i32
  }
  func.func @transform_3(%arg0: i32) -> (i32, i32) {
    %c0_i32 = arith.constant 0 : i32
    %c0_i32_0 = arith.constant 0 : i32
    %c0_i32_1 = arith.constant 0 : i32
    return %c0_i32, %c0_i32_0 : i32, i32
  }
  func.func @transform_4(%arg0: i32) -> (i32, i32) {
    %c0_i32 = arith.constant 0 : i32
    %c0_i32_0 = arith.constant 0 : i32
    return %arg0, %c0_i32 : i32, i32
  }
}

</mosaic_0001>

<llo_original>
// kernel: class_specific_band_enhancement.1
$region0: #{class_specific_band_enhancement.1}
  #allocation0 [shape = 'u32[]', space=smem, size = 0x4, offset = 0x4, fixed_abs, tag = 'smem constant byte address 0x4 - core index']
  #allocation1 [shape = 'u32[144,128]{1,0:T(1,128)}', space=vmem, size = 0x12000, scoped, tag = 'internal scratch']
  %s0 = inlined_call_operand.vmem [shape: s32[8,1], index: 0, kind: input, shape index: {}]
  %s1 = inlined_call_operand.vmem [shape: bf16[128,200], index: 1, kind: input, shape index: {}]
  %s2 = inlined_call_operand.vmem [shape: bf16[128,200], index: 2, kind: input, shape index: {}]
  %s3 = inlined_call_operand.vmem [shape: bf16[128,200], index: 3, kind: input, shape index: {}]
  %s4 = inlined_call_operand.hbm [shape: f32[8,200], index: 4, kind: output, shape index: {}]
  %s5 = sld [smem:[#allocation0]]
  $region26: #{class_specific_band_enhancement.1} parent=0
    _
  %s7 = ssub.s32 1, %s5
  %s8 = scalar_select 0, %s7, %s5
  $region1: #{class_specific_band_enhancement.1} parent=0
    #allocation2 [shape = 'u8[8192]{0}', space=vmem, size = 0x2000, scoped, tag = 'output window, operand 0, single buffered']
    #allocation3 [shape = 's32[1]{0}', space=sflag, size = 0x4, scoped, tag = 'scoped memory for class_specific_band_enhancement.1']
    %9 = vsyncpa [#allocation3], 0
    // Predicated region
    $region2: #{class_specific_band_enhancement.1} parent=1 // pred_check
      _
    $region3: #{class_specific_band_enhancement.1} parent=1 // pred_check_branch
      %11 = sbr.rel (0) target = $region5
    $region4: #{class_specific_band_enhancement.1} parent=1 // pred_region
      _
    $region5: #{class_specific_band_enhancement.1} parent=1 // pred_fallthru
      _
    // Predicated region
    $region6: #{class_specific_band_enhancement.1} parent=1 // pred_check
      _
    $region7: #{class_specific_band_enhancement.1} parent=1 // pred_check_branch
      %13 = sbr.rel (0) target = $region9
    $region8: #{class_specific_band_enhancement.1} parent=1 // pred_region
      _
    $region9: #{class_specific_band_enhancement.1} parent=1 // pred_fallthru
      _
    // Predicated region
    $region10: #{class_specific_band_enhancement.1} parent=1 // pred_check
      _
    $region11: #{class_specific_band_enhancement.1} parent=1 // pred_check_branch
      %15 = sbr.rel (0) target = $region13
    $region12: #{class_specific_band_enhancement.1} parent=1 // pred_region
      _
    $region13: #{class_specific_band_enhancement.1} parent=1 // pred_fallthru
      _
    // Predicated region
    $region14: #{class_specific_band_enhancement.1} parent=1 // pred_check
      _
    $region15: #{class_specific_band_enhancement.1} parent=1 // pred_check_branch
      %17 = sbr.rel (0) target = $region17
    $region16: #{class_specific_band_enhancement.1} parent=1 // pred_region
      _
    $region17: #{class_specific_band_enhancement.1} parent=1 // pred_fallthru
      _
    %v19 = vlaneseq
    %v20 = vand.u32 %v19, 127
    %v21 = vld [vmem:[%s0] sm:$0xff]
    %22 = vset.pattern.permute.xlu0 0
    %23 = vperm.xlu0 %22, %v21
    %v24 = vpop.permute.xlu0 %23
    %vm25 = vcmp.eq.s32.totalorder %v24, %v20
    %v26 = vsel %vm25, 1, 0
    %v27 = vcvt.s32.f32 %v26
    %v28 = vpack.c.bf16 %v27, %v27
    %v29 = vld [vmem:[%s1] sm:$0xff]
    %v30 = vld [vmem:[%s1 + $0x8] sm:$0xff]
    %v31 = vld [vmem:[%s1 + $0x10] sm:$0xff]
    %v32 = vld [vmem:[%s1 + $0x18] sm:$0xff]
    %v33 = vld [vmem:[%s1 + $0x20] sm:$0xff]
    %v34 = vld [vmem:[%s1 + $0x28] sm:$0xff]
    %v35 = vld [vmem:[%s1 + $0x30] sm:$0xff]
    %v36 = vld [vmem:[%s1 + $0x38] sm:$0xff]
    %v37 = vld [vmem:[%s1 + $0x40] sm:$0xff]
    %v38 = vld [vmem:[%s1 + $0x48] sm:$0xff]
    %v39 = vld [vmem:[%s1 + $0x50] sm:$0xff]
    %v40 = vld [vmem:[%s1 + $0x58] sm:$0xff]
    %v41 = vld [vmem:[%s1 + $0x60] sm:$0xff]
    %v42 = vld [vmem:[%s1 + $0x68] sm:$0xff]
    %v43 = vld [vmem:[%s1 + $0x70] sm:$0xff]
    %v44 = vld [vmem:[%s1 + $0x78] sm:$0xff]
    %v45 = vld [vmem:[%s2] sm:$0xff]
    %v46 = vld [vmem:[%s2 + $0x8] sm:$0xff]
    %v47 = vld [vmem:[%s2 + $0x10] sm:$0xff]
    %v48 = vld [vmem:[%s2 + $0x18] sm:$0xff]
    %v49 = vld [vmem:[%s2 + $0x20] sm:$0xff]
    %v50 = vld [vmem:[%s2 + $0x28] sm:$0xff]
    %v51 = vld [vmem:[%s2 + $0x30] sm:$0xff]
    %v52 = vld [vmem:[%s2 + $0x38] sm:$0xff]
    %v53 = vld [vmem:[%s2 + $0x40] sm:$0xff]
    %v54 = vld [vmem:[%s2 + $0x48] sm:$0xff]
    %v55 = vld [vmem:[%s2 + $0x50] sm:$0xff]
    %v56 = vld [vmem:[%s2 + $0x58] sm:$0xff]
    %v57 = vld [vmem:[%s2 + $0x60] sm:$0xff]
    %v58 = vld [vmem:[%s2 + $0x68] sm:$0xff]
    %v59 = vld [vmem:[%s2 + $0x70] sm:$0xff]
    %v60 = vld [vmem:[%s2 + $0x78] sm:$0xff]
    %v77 = vunpack.c.l.b16 %v45
    %v78 = vunpack.c.h.b16 %v45
    %v79 = vunpack.c.l.b16 %v46
    %v80 = vunpack.c.h.b16 %v46
    %v81 = vunpack.c.l.b16 %v47
    %v82 = vunpack.c.h.b16 %v47
    %v83 = vunpack.c.l.b16 %v48
    %v84 = vunpack.c.h.b16 %v48
    %v85 = vunpack.c.l.b16 %v49
    %v86 = vunpack.c.h.b16 %v49
    %v87 = vunpack.c.l.b16 %v50
    %v88 = vunpack.c.h.b16 %v50
    %v89 = vunpack.c.l.b16 %v51
    %v90 = vunpack.c.h.b16 %v51
    %v91 = vunpack.c.l.b16 %v52
    %v92 = vunpack.c.h.b16 %v52
    %v93 = vunpack.c.l.b16 %v53
    %v94 = vunpack.c.h.b16 %v53
    %v95 = vunpack.c.l.b16 %v54
    %v96 = vunpack.c.h.b16 %v54
    %v97 = vunpack.c.l.b16 %v55
    %v98 = vunpack.c.h.b16 %v55
    %v99 = vunpack.c.l.b16 %v56
    %v100 = vunpack.c.h.b16 %v56
    %v101 = vunpack.c.l.b16 %v57
    %v102 = vunpack.c.h.b16 %v57
    %v103 = vunpack.c.l.b16 %v58
    %v104 = vunpack.c.h.b16 %v58
    %v105 = vunpack.c.l.b16 %v59
    %v106 = vunpack.c.h.b16 %v59
    %v107 = vunpack.c.l.b16 %v60
    %v108 = vunpack.c.h.b16 %v60
    %v109 = vpack.c.b16 %v79, %v77
    %v110 = vpack.c.b16 %v80, %v78
    %v111 = vpack.c.b16 %v83, %v81
    %v112 = vpack.c.b16 %v84, %v82
    %v113 = vpack.c.b16 %v87, %v85
    %v114 = vpack.c.b16 %v88, %v86
    %v115 = vpack.c.b16 %v91, %v89
    %v116 = vpack.c.b16 %v92, %v90
    %v117 = vpack.c.b16 %v95, %v93
    %v118 = vpack.c.b16 %v96, %v94
    %v119 = vpack.c.b16 %v99, %v97
    %v120 = vpack.c.b16 %v100, %v98
    %v121 = vpack.c.b16 %v103, %v101
    %v122 = vpack.c.b16 %v104, %v102
    %v123 = vpack.c.b16 %v107, %v105
    %v124 = vpack.c.b16 %v108, %v106
    %141 = vmatprep.subr.bf16.mxu0 %v110
    %142 = vmatpush1.bf16.msra.mxu0 %v109
    %143 = vmatprep.subr.bf16.mxu0 %v112
    %144 = vmatpush1.bf16.msra.mxu0 %v111
    %145 = vmatprep.subr.bf16.mxu0 %v114
    %146 = vmatpush1.bf16.msra.mxu0 %v113
    %147 = vmatprep.subr.bf16.mxu0 %v116
    %148 = vmatpush1.bf16.msra.mxu0 %v115
    %149 = vmatprep.subr.bf16.mxu0 %v118
    %150 = vmatpush1.bf16.msra.mxu0 %v117
    %151 = vmatprep.subr.bf16.mxu0 %v120
    %152 = vmatpush1.bf16.msra.mxu0 %v119
    %153 = vmatprep.subr.bf16.mxu0 %v122
    %154 = vmatpush1.bf16.msra.mxu0 %v121
    %155 = vmatprep.subr.bf16.mxu0 %v124
    %156 = vmatpush1.bf16.msra.mxu0 %v123
    %157 = vmatprep.subr.bf16.mxu0 0
    %158 = vmatpush1.bf16.msra.mxu0 0
    %159 = vmatprep.subr.bf16.mxu0 0
    %160 = vmatpush1.bf16.msra.mxu0 0
    %161 = vmatprep.subr.bf16.mxu0 0
    %162 = vmatpush1.bf16.msra.mxu0 0
    %163 = vmatprep.subr.bf16.mxu0 0
    %164 = vmatpush1.bf16.msra.mxu0 0
    %165 = vmatprep.subr.bf16.mxu0 0
    %166 = vmatpush1.bf16.msra.mxu0 0
    %167 = vmatprep.subr.bf16.mxu0 0
    %168 = vmatpush1.bf16.msra.mxu0 0
    %169 = vmatprep.subr.bf16.mxu0 0
    %170 = vmatpush1.bf16.msra.mxu0 0
    %171 = vmatprep.subr.bf16.mxu0 0
    %172 = vmatpush1.bf16.msra.mxu0 0
    %173 = vmatprep.mubr.bf16.mxu0 0
    %174 = vmatmul.mubr.bf16.gmra.mrb[0].mxu0 %v28
    %v175 = vpop.f32.mrb[0].mxu0
    %v176 = vadd.f32 0.0, %v175
    %v177 = vpop.f32.mrb[0].mxu0
    %v178 = vadd.f32 0.0, %v177
    %v179 = vpop.f32.mrb[0].mxu0
    %v180 = vpop.f32.mrb[0].mxu0
    %181 = vdwg.mxu0
    %v198 = vunpack.c.l.b16 %v29
    %v199 = vunpack.c.h.b16 %v29
    %v200 = vunpack.c.l.b16 %v30
    %v201 = vunpack.c.h.b16 %v30
    %v202 = vunpack.c.l.b16 %v31
    %v203 = vunpack.c.h.b16 %v31
    %v204 = vunpack.c.l.b16 %v32
    %v205 = vunpack.c.h.b16 %v32
    %v206 = vunpack.c.l.b16 %v33
    %v207 = vunpack.c.h.b16 %v33
    %v208 = vunpack.c.l.b16 %v34
    %v209 = vunpack.c.h.b16 %v34
    %v210 = vunpack.c.l.b16 %v35
    %v211 = vunpack.c.h.b16 %v35
    %v212 = vunpack.c.l.b16 %v36
    %v213 = vunpack.c.h.b16 %v36
    %v214 = vunpack.c.l.b16 %v37
    %v215 = vunpack.c.h.b16 %v37
    %v216 = vunpack.c.l.b16 %v38
    %v217 = vunpack.c.h.b16 %v38
    %v218 = vunpack.c.l.b16 %v39
    %v219 = vunpack.c.h.b16 %v39
    %v220 = vunpack.c.l.b16 %v40
    %v221 = vunpack.c.h.b16 %v40
    %v222 = vunpack.c.l.b16 %v41
    %v223 = vunpack.c.h.b16 %v41
    %v224 = vunpack.c.l.b16 %v42
    %v225 = vunpack.c.h.b16 %v42
    %v226 = vunpack.c.l.b16 %v43
    %v227 = vunpack.c.h.b16 %v43
    %v228 = vunpack.c.l.b16 %v44
    %v229 = vunpack.c.h.b16 %v44
    %v230 = vpack.c.b16 %v200, %v198
    %v231 = vpack.c.b16 %v201, %v199
    %v232 = vpack.c.b16 %v204, %v202
    %v233 = vpack.c.b16 %v205, %v203
    %v234 = vpack.c.b16 %v208, %v206
    %v235 = vpack.c.b16 %v209, %v207
    %v236 = vpack.c.b16 %v212, %v210
    %v237 = vpack.c.b16 %v213, %v211
    %v238 = vpack.c.b16 %v216, %v214
    %v239 = vpack.c.b16 %v217, %v215
    %v240 = vpack.c.b16 %v220, %v218
    %v241 = vpack.c.b16 %v221, %v219
    %v242 = vpack.c.b16 %v224, %v222
    %v243 = vpack.c.b16 %v225, %v223
    %v244 = vpack.c.b16 %v228, %v226
    %v245 = vpack.c.b16 %v229, %v227
    %262 = vmatprep.subr.bf16.mxu0 %v231
    %263 = vmatpush1.bf16.msra.mxu0 %v230
    %264 = vmatprep.subr.bf16.mxu0 %v233
    %265 = vmatpush1.bf16.msra.mxu0 %v232
    %266 = vmatprep.subr.bf16.mxu0 %v235
    %267 = vmatpush1.bf16.msra.mxu0 %v234
    %268 = vmatprep.subr.bf16.mxu0 %v237
    %269 = vmatpush1.bf16.msra.mxu0 %v236
    %270 = vmatprep.subr.bf16.mxu0 %v239
    %271 = vmatpush1.bf16.msra.mxu0 %v238
    %272 = vmatprep.subr.bf16.mxu0 %v241
    %273 = vmatpush1.bf16.msra.mxu0 %v240
    %274 = vmatprep.subr.bf16.mxu0 %v243
    %275 = vmatpush1.bf16.msra.mxu0 %v242
    %276 = vmatprep.subr.bf16.mxu0 %v245
    %277 = vmatpush1.bf16.msra.mxu0 %v244
    %278 = vmatprep.subr.bf16.mxu0 0
    %279 = vmatpush1.bf16.msra.mxu0 0
    %280 = vmatprep.subr.bf16.mxu0 0
    %281 = vmatpush1.bf16.msra.mxu0 0
    %282 = vmatprep.subr.bf16.mxu0 0
    %283 = vmatpush1.bf16.msra.mxu0 0
    %284 = vmatprep.subr.bf16.mxu0 0
    %285 = vmatpush1.bf16.msra.mxu0 0
    %286 = vmatprep.subr.bf16.mxu0 0
    %287 = vmatpush1.bf16.msra.mxu0 0
    %288 = vmatprep.subr.bf16.mxu0 0
    %289 = vmatpush1.bf16.msra.mxu0 0
    %290 = vmatprep.subr.bf16.mxu0 0
    %291 = vmatpush1.bf16.msra.mxu0 0
    %292 = vmatprep.subr.bf16.mxu0 0
    %293 = vmatpush1.bf16.msra.mxu0 0
    %294 = vmatprep.mubr.bf16.mxu0 0
    %295 = vmatmul.mubr.bf16.gmra.mrb[0].mxu0 %v28
    %v296 = vpop.f32.mrb[0].mxu0
    %v297 = vadd.f32 %v176, %v296
    %v298 = vpop.f32.mrb[0].mxu0
    %v299 = vadd.f32 %v178, %v298
    %v300 = vpop.f32.mrb[0].mxu0
    %v301 = vpop.f32.mrb[0].mxu0
    %302 = vdwg.mxu0
    %v303 = vld [vmem:[%s3] sm:$0xff]
    %v304 = vld [vmem:[%s3 + $0x8] sm:$0xff]
    %v305 = vld [vmem:[%s3 + $0x10] sm:$0xff]
    %v306 = vld [vmem:[%s3 + $0x18] sm:$0xff]
    %v307 = vld [vmem:[%s3 + $0x20] sm:$0xff]
    %v308 = vld [vmem:[%s3 + $0x28] sm:$0xff]
    %v309 = vld [vmem:[%s3 + $0x30] sm:$0xff]
    %v310 = vld [vmem:[%s3 + $0x38] sm:$0xff]
    %v311 = vld [vmem:[%s3 + $0x40] sm:$0xff]
    %v312 = vld [vmem:[%s3 + $0x48] sm:$0xff]
    %v313 = vld [vmem:[%s3 + $0x50] sm:$0xff]
    %v314 = vld [vmem:[%s3 + $0x58] sm:$0xff]
    %v315 = vld [vmem:[%s3 + $0x60] sm:$0xff]
    %v316 = vld [vmem:[%s3 + $0x68] sm:$0xff]
    %v317 = vld [vmem:[%s3 + $0x70] sm:$0xff]
    %v318 = vld [vmem:[%s3 + $0x78] sm:$0xff]
    %v335 = vunpack.c.l.b16 %v303
    %v336 = vunpack.c.h.b16 %v303
    %v337 = vunpack.c.l.b16 %v304
    %v338 = vunpack.c.h.b16 %v304
    %v339 = vunpack.c.l.b16 %v305
    %v340 = vunpack.c.h.b16 %v305
    %v341 = vunpack.c.l.b16 %v306
    %v342 = vunpack.c.h.b16 %v306
    %v343 = vunpack.c.l.b16 %v307
    %v344 = vunpack.c.h.b16 %v307
    %v345 = vunpack.c.l.b16 %v308
    %v346 = vunpack.c.h.b16 %v308
    %v347 = vunpack.c.l.b16 %v309
    %v348 = vunpack.c.h.b16 %v309
    %v349 = vunpack.c.l.b16 %v310
    %v350 = vunpack.c.h.b16 %v310
    %v351 = vunpack.c.l.b16 %v311
    %v352 = vunpack.c.h.b16 %v311
    %v353 = vunpack.c.l.b16 %v312
    %v354 = vunpack.c.h.b16 %v312
    %v355 = vunpack.c.l.b16 %v313
    %v356 = vunpack.c.h.b16 %v313
    %v357 = vunpack.c.l.b16 %v314
    %v358 = vunpack.c.h.b16 %v314
    %v359 = vunpack.c.l.b16 %v315
    %v360 = vunpack.c.h.b16 %v315
    %v361 = vunpack.c.l.b16 %v316
    %v362 = vunpack.c.h.b16 %v316
    %v363 = vunpack.c.l.b16 %v317
    %v364 = vunpack.c.h.b16 %v317
    %v365 = vunpack.c.l.b16 %v318
    %v366 = vunpack.c.h.b16 %v318
    %v367 = vpack.c.b16 %v337, %v335
    %v368 = vpack.c.b16 %v338, %v336
    %v369 = vpack.c.b16 %v341, %v339
    %v370 = vpack.c.b16 %v342, %v340
    %v371 = vpack.c.b16 %v345, %v343
    %v372 = vpack.c.b16 %v346, %v344
    %v373 = vpack.c.b16 %v349, %v347
    %v374 = vpack.c.b16 %v350, %v348
    %v375 = vpack.c.b16 %v353, %v351
    %v376 = vpack.c.b16 %v354, %v352
    %v377 = vpack.c.b16 %v357, %v355
    %v378 = vpack.c.b16 %v358, %v356
    %v379 = vpack.c.b16 %v361, %v359
    %v380 = vpack.c.b16 %v362, %v360
    %v381 = vpack.c.b16 %v365, %v363
    %v382 = vpack.c.b16 %v366, %v364
    %399 = vmatprep.subr.bf16.mxu0 %v368
    %400 = vmatpush1.bf16.msra.mxu0 %v367
    %401 = vmatprep.subr.bf16.mxu0 %v370
    %402 = vmatpush1.bf16.msra.mxu0 %v369
    %403 = vmatprep.subr.bf16.mxu0 %v372
    %404 = vmatpush1.bf16.msra.mxu0 %v371
    %405 = vmatprep.subr.bf16.mxu0 %v374
    %406 = vmatpush1.bf16.msra.mxu0 %v373
    %407 = vmatprep.subr.bf16.mxu0 %v376
    %408 = vmatpush1.bf16.msra.mxu0 %v375
    %409 = vmatprep.subr.bf16.mxu0 %v378
    %410 = vmatpush1.bf16.msra.mxu0 %v377
    %411 = vmatprep.subr.bf16.mxu0 %v380
    %412 = vmatpush1.bf16.msra.mxu0 %v379
    %413 = vmatprep.subr.bf16.mxu0 %v382
    %414 = vmatpush1.bf16.msra.mxu0 %v381
    %415 = vmatprep.subr.bf16.mxu0 0
    %416 = vmatpush1.bf16.msra.mxu0 0
    %417 = vmatprep.subr.bf16.mxu0 0
    %418 = vmatpush1.bf16.msra.mxu0 0
    %419 = vmatprep.subr.bf16.mxu0 0
    %420 = vmatpush1.bf16.msra.mxu0 0
    %421 = vmatprep.subr.bf16.mxu0 0
    %422 = vmatpush1.bf16.msra.mxu0 0
    %423 = vmatprep.subr.bf16.mxu0 0
    %424 = vmatpush1.bf16.msra.mxu0 0
    %425 = vmatprep.subr.bf16.mxu0 0
    %426 = vmatpush1.bf16.msra.mxu0 0
    %427 = vmatprep.subr.bf16.mxu0 0
    %428 = vmatpush1.bf16.msra.mxu0 0
    %429 = vmatprep.subr.bf16.mxu0 0
    %430 = vmatpush1.bf16.msra.mxu0 0
    %431 = vmatprep.mubr.bf16.mxu0 0
    %432 = vmatmul.mubr.bf16.gmra.mrb[0].mxu0 %v28
    %v433 = vpop.f32.mrb[0].mxu0
    %v434 = vadd.f32 0.0, %v433
    %v435 = vpop.f32.mrb[0].mxu0
    %v436 = vadd.f32 0.0, %v435
    %v437 = vpop.f32.mrb[0].mxu0
    %v438 = vpop.f32.mrb[0].mxu0
    %439 = vdwg.mxu0
    %v440 = vadd.f32 %v297, %v434
    %v441 = vadd.f32 %v299, %v436
    %442 = vst [vmem:[#allocation2] sm:$0xff] %v440
    %vm443 = vcmask 588800
    %444 = vst.msk [vmem:[#allocation2 + $0x8] sm:$0xff] %vm443, %v441
    // Predicated region
    $region18: #{class_specific_band_enhancement.1} parent=1 // pred_check
      _
    $region19: #{class_specific_band_enhancement.1} parent=1 // pred_check_branch
      %446 = sbr.rel (0) target = $region21
    $region20: #{class_specific_band_enhancement.1} parent=1 // pred_region
      %s448 = ssub.s32 256, 256
      %449 = vsyncadd [#allocation3], %s448
      %s451 = sshll.u32 [#allocation2], 4
      %s452 = int_to_ptr.vmem [resolvable:$true] %s451
      %454 = dma.vmem_to_hbm [thread:$0]  %s452, 256, %s4, [#allocation3]
    $region21: #{class_specific_band_enhancement.1} parent=1 // pred_fallthru
      _
    // Predicated region
    $region22: #{class_specific_band_enhancement.1} parent=1 // pred_check
      _
    $region23: #{class_specific_band_enhancement.1} parent=1 // pred_check_branch
      %456 = sbr.rel (0) target = $region25
    $region24: #{class_specific_band_enhancement.1} parent=1 // pred_region
      %457 = dma.done [#allocation3], 256
    $region25: #{class_specific_band_enhancement.1} parent=1 // pred_fallthru
      _
    %458 = vsyncpa [#allocation3], 1

</llo_original>
